<compile_context>
chip_gen: v6e
topology: v6e:2x2x1
jax: 0.10.0
libtpu: 0.0.40
codegen_flags: <defaults>
</compile_context>

<pallas_src>
import functools

import jax
import jax.numpy as jnp
import numpy as np
from jax.experimental import pallas as pl
from jax.experimental.pallas import tpu as pltpu


def _round_up(x, m):
    return (x + m - 1) // m * m


def _vmem_budget_bytes():
    """~75% of per-core VMEM; conservative fallback that is safe on v7x."""
    try:
        cap = int(pltpu.get_tpu_info().vmem_capacity_bytes)
    except Exception:
        cap = 64 * 1024 * 1024
    return min(cap * 3 // 4, 112 * 1024 * 1024)


# --------------------------------------------------------------------------
# Fused kernel: whole (1, C, HW) batch row resident per grid step.
# --------------------------------------------------------------------------
def _fused_kernel(x_ref, w1_ref, b1_ref, w2_ref, b2_ref, exp_ref, o_ref, *, inv_hw):
    x = x_ref[...]                                                   # (1, C, HW), native dtype
    pooled = jnp.sum(x.astype(jnp.float32), axis=-1) * inv_hw        # (1, C)  avg pool
    h = jnp.dot(pooled, w1_ref[...], preferred_element_type=jnp.float32) + b1_ref[...]
    h = jnp.maximum(h, 0.0)                                          # (1, Hid)
    att = jnp.dot(h, w2_ref[...], preferred_element_type=jnp.float32) + b2_ref[...]
    sig = jax.nn.sigmoid(att)                                        # (1, K)
    # scale[b, c] = sig[b, c % K] via one-hot (K, C) expand; runs once per row.
    scale = jnp.dot(sig, exp_ref[...], preferred_element_type=jnp.float32)  # (1, C)
    o_ref[...] = (x * scale.astype(x.dtype)[:, :, None]).astype(o_ref.dtype)


# --------------------------------------------------------------------------
# Tiled fallback, phase 1: lane-wise partial sums (masked ragged tail).
# --------------------------------------------------------------------------
def _pool_kernel(x_ref, psum_ref, *, hw, tile):
    t = pl.program_id(1)

    @pl.when(t == 0)
    def _():
        psum_ref[...] = jnp.zeros_like(psum_ref)

    xf = x_ref[...].astype(jnp.float32)                              # (1, C, tile)
    base = t * tile
    acc = psum_ref[...]                                              # (1, C, 128)
    for k in range(tile // 128):                                     # unrolled, VALU-only adds
        chunk = xf[:, :, k * 128:(k + 1) * 128]
        lane = jax.lax.broadcasted_iota(jnp.int32, chunk.shape, 2)
        acc = acc + jnp.where(base + k * 128 + lane < hw, chunk, 0.0)
    psum_ref[...] = acc


# --------------------------------------------------------------------------
# Tiled fallback, phase 3: streaming gated multiply.
# --------------------------------------------------------------------------
def _apply_kernel(x_ref, scale_ref, o_ref):
    o_ref[...] = (x_ref[...] * scale_ref[...]).astype(o_ref.dtype)


def channel_gate(x_nchw, w1, b1, w2, b2, face_classes, *, lane_tile=2048,
                 vmem_limit_bytes=None, force_tiled=False):
    """ChannelGate forward (pool_types=['avg']).

    x_nchw: (B, C, H, W).  w1: (Hid, C), b1: (Hid,), w2: (K, Hid), b2: (K,)
    (PyTorch nn.Linear layouts).  Returns (B, C, H, W) in x's dtype.
    """
    B, C, H, W = x_nchw.shape
    K = int(face_classes)
    Hid = int(w1.shape[0])
    assert C % K == 0
    HW = H * W

    x3 = x_nchw.reshape(B, C, HW)
    itemsize = jnp.dtype(x3.dtype).itemsize
    budget = int(vmem_limit_bytes) if vmem_limit_bytes is not None else _vmem_budget_bytes()

    # PyTorch nn.Linear weights are (out, in); transpose for in-kernel dots.
    w1_t = jnp.asarray(w1, jnp.float32).T                            # (C, Hid)
    w2_t = jnp.asarray(w2, jnp.float32).T                            # (Hid, K)
    b1_2d = jnp.asarray(b1, jnp.float32)[None, :]                    # (1, Hid)
    b2_2d = jnp.asarray(b2, jnp.float32)[None, :]                    # (1, K)

    # Per-row VMEM need for the fused path: double-buffered in + out blocks
    # plus the f32 pooling intermediate, with slack for the tiny operands.
    fused_need = C * HW * (4 * itemsize + 8) + (1 << 20)

    if not force_tiled and fused_need <= budget:
        expand = (jnp.arange(C)[None, :] % K ==
                  jnp.arange(K)[:, None]).astype(jnp.float32)        # (K, C) one-hot
        out3 = pl.pallas_call(
            functools.partial(_fused_kernel, inv_hw=1.0 / HW),
            out_shape=jax.ShapeDtypeStruct((B, C, HW), x3.dtype),
            grid_spec=pltpu.PrefetchScalarGridSpec(
                num_scalar_prefetch=0,
                grid=(B,),
                in_specs=[pl.BlockSpec((1, C, HW), lambda b: (b, 0, 0)),
                          pl.BlockSpec((C, Hid), lambda b: (0, 0)),
                          pl.BlockSpec((1, Hid), lambda b: (0, 0)),
                          pl.BlockSpec((Hid, K), lambda b: (0, 0)),
                          pl.BlockSpec((1, K), lambda b: (0, 0)),
                          pl.BlockSpec((K, C), lambda b: (0, 0))],
                out_specs=pl.BlockSpec((1, C, HW), lambda b: (b, 0, 0)),
            ),
            compiler_params=pltpu.CompilerParams(
                dimension_semantics=("parallel",),
                vmem_limit_bytes=budget),
        )(x3, w1_t, b1_2d, w2_t, b2_2d, expand)
        return out3.reshape(B, C, H, W)

    # ---------------- tiled fallback (row too big for whole-row residency) ----
    T = _round_up(min(int(lane_tile), HW), 128)
    while T > 128 and C * T * (4 * itemsize + 8) > budget:
        T -= 128
    n_t = pl.cdiv(HW, T)

    psum = pl.pallas_call(
        functools.partial(_pool_kernel, hw=HW, tile=T),
        out_shape=jax.ShapeDtypeStruct((B, C, 128), jnp.float32),
        grid_spec=pltpu.PrefetchScalarGridSpec(
            num_scalar_prefetch=0,
            grid=(B, n_t),
            in_specs=[pl.BlockSpec((1, C, T), lambda b, t: (b, 0, t))],
            out_specs=pl.BlockSpec((1, C, 128), lambda b, t: (b, 0, 0)),
        ),
        compiler_params=pltpu.CompilerParams(
            dimension_semantics=("parallel", "arbitrary"),
            vmem_limit_bytes=budget),
    )(x3)

    # Tiny MLP gate in plain JAX (runs once; O(B*C), not worth a launch).
    pooled = jnp.sum(psum, axis=-1) * (1.0 / HW)                     # (B, C)
    h = jax.nn.relu(pooled @ w1_t + b1_2d)                           # (B, Hid)
    att = h @ w2_t + b2_2d                                           # (B, K)
    sig = jax.nn.sigmoid(att)
    scale = jnp.tile(sig, (1, C // K))                               # scale[b, c] = sig[b, c % K]
    scale3 = scale[:, :, None].astype(x3.dtype)                      # (B, C, 1)

    out3 = pl.pallas_call(
        _apply_kernel,
        out_shape=jax.ShapeDtypeStruct((B, C, HW), x3.dtype),
        grid_spec=pltpu.PrefetchScalarGridSpec(
            num_scalar_prefetch=0,
            grid=(B, n_t),
            in_specs=[pl.BlockSpec((1, C, T), lambda b, t: (b, 0, t)),
                      pl.BlockSpec((1, C, 1), lambda b, t: (b, 0, 0))],
            out_specs=pl.BlockSpec((1, C, T), lambda b, t: (b, 0, t)),
        ),
        compiler_params=pltpu.CompilerParams(
            dimension_semantics=("parallel", "parallel"),
            vmem_limit_bytes=budget),
    )(x3, scale3)
    return out3.reshape(B, C, H, W)


def channel_gate_ref(x, w1, b1, w2, b2, K):
    """Pure-JAX reference matching the PyTorch forward (pool_types=['avg'])."""
    B, C, H, W = x.shape
    pooled = x.mean(axis=(2, 3))
    h = jax.nn.relu(pooled @ w1.T + b1)
    att = h @ w2.T + b2                                              # (B, K)
    sig = jax.nn.sigmoid(att)
    scale = sig[:, None, :, None, None]                              # (B, 1, K, 1, 1)
    xg = x.reshape(B, C // K, K, H, W)
    return (xg * scale).reshape(B, C, H, W)


if __name__ == "__main__":
    # Module config (defaults: reduction_ratio=16, pool_types=['avg'])
    gate_channels = 32
    reduction_ratio = 16
    face_classes = 4
    hidden = gate_channels // reduction_ratio                        # 2

    key = jax.random.PRNGKey(0)
    kx, k1, k2, k3, k4, kx2 = jax.random.split(key, 6)

    # Deterministic synthetic Linear params (torch shapes: (out, in) weights)
    w1 = jax.random.normal(k1, (hidden, gate_channels), jnp.float32) / np.sqrt(gate_channels)
    b1 = jax.random.normal(k2, (hidden,), jnp.float32) * 0.1
    w2 = jax.random.normal(k3, (face_classes, hidden), jnp.float32) / np.sqrt(hidden)
    b2 = jax.random.normal(k4, (face_classes,), jnp.float32) * 0.1

    # --- fused (primary) path: whole (C, HW) row resident per grid step -------
    B, C, H, W = 2, gate_channels, 16, 16
    x = jax.random.normal(kx, (B, C, H, W), dtype=jnp.float32)
    out = jax.block_until_ready(channel_gate(x, w1, b1, w2, b2, face_classes))
    ref = channel_gate_ref(x, w1, b1, w2, b2, face_classes)
    np.testing.assert_allclose(np.asarray(out), np.asarray(ref), atol=1e-5, rtol=1e-5)

    # --- tiled fallback path: ragged HW (30*30=900) across several lane tiles -
    B2, H2, W2 = 2, 30, 30
    x2 = jax.random.normal(kx2, (B2, gate_channels, H2, W2), dtype=jnp.float32)
    out2 = jax.block_until_ready(
        channel_gate(x2, w1, b1, w2, b2, face_classes, lane_tile=256, force_tiled=True))
    ref2 = channel_gate_ref(x2, w1, b1, w2, b2, face_classes)
    np.testing.assert_allclose(np.asarray(out2), np.asarray(ref2), atol=1e-5, rtol=1e-5)

    print("KERNEL_OK")
</pallas_src>

<mosaic_0001>
module attributes {stable_mosaic.version = 11 : i64} {
  func.func @_fused_kernel(%arg0: i32, %arg1: memref<1x32x256xf32, #tpu.memory_space<vmem>>, %arg2: memref<32x2xf32, #tpu.memory_space<vmem>>, %arg3: memref<1x2xf32, #tpu.memory_space<vmem>>, %arg4: memref<2x4xf32, #tpu.memory_space<vmem>>, %arg5: memref<1x4xf32, #tpu.memory_space<vmem>>, %arg6: memref<4x32xf32, #tpu.memory_space<vmem>>, %arg7: memref<1x32x256xf32, #tpu.memory_space<vmem>>) attributes {dimension_semantics = [#tpu.dimension_semantics<parallel>], iteration_bounds = array<i64: 2>, scalar_prefetch = 0 : i64, scratch_operands = 0 : i64, tpu.core_type = #tpu.core_type<tc>, window_params = [{transform_indices = @transform_0, window_bounds = array<i64: 1, 32, 256>}, {pipeline_mode = #tpu.pipeline_mode<synchronous>, transform_indices = @transform_1, window_bounds = array<i64: 32, 2>}, {pipeline_mode = #tpu.pipeline_mode<synchronous>, transform_indices = @transform_2, window_bounds = array<i64: 1, 2>}, {pipeline_mode = #tpu.pipeline_mode<synchronous>, transform_indices = @transform_3, window_bounds = array<i64: 2, 4>}, {pipeline_mode = #tpu.pipeline_mode<synchronous>, transform_indices = @transform_4, window_bounds = array<i64: 1, 4>}, {pipeline_mode = #tpu.pipeline_mode<synchronous>, transform_indices = @transform_5, window_bounds = array<i64: 4, 32>}, {transform_indices = @transform_6, window_bounds = array<i64: 1, 32, 256>}]} {
    %c0 = arith.constant 0 : index
    %c0_0 = arith.constant 0 : index
    %c0_1 = arith.constant 0 : index
    %0 = vector.load %arg1[%c0, %c0_0, %c0_1] : memref<1x32x256xf32, #tpu.memory_space<vmem>>, vector<1x32x256xf32>
    %cst = arith.constant dense<0.000000e+00> : vector<1x32xf32>
    %1 = vector.multi_reduction <add>, %0, %cst [2] : vector<1x32x256xf32> to vector<1x32xf32>
    %cst_2 = arith.constant 3.906250e-03 : f32
    %2 = vector.broadcast %cst_2 : f32 to vector<1x32xf32>
    %3 = arith.mulf %1, %2 : vector<1x32xf32>
    %c0_3 = arith.constant 0 : index
    %c0_4 = arith.constant 0 : index
    %4 = vector.load %arg2[%c0_3, %c0_4] : memref<32x2xf32, #tpu.memory_space<vmem>>, vector<32x2xf32>
    %cst_5 = arith.constant dense<0.000000e+00> : vector<1x2xf32>
    %5 = tpu.matmul %3, %4, %cst_5 {dimension_numbers = #tpu.dot_dimension_numbers<[1], [0], [0], [1], [0, 0, 1, 1], [], []>} : vector<1x32xf32>, vector<32x2xf32>, vector<1x2xf32> -> vector<1x2xf32>
    %c0_6 = arith.constant 0 : index
    %c0_7 = arith.constant 0 : index
    %6 = vector.load %arg3[%c0_6, %c0_7] : memref<1x2xf32, #tpu.memory_space<vmem>>, vector<1x2xf32>
    %7 = arith.addf %5, %6 : vector<1x2xf32>
    %cst_8 = arith.constant 0.000000e+00 : f32
    %8 = vector.broadcast %cst_8 : f32 to vector<1x2xf32>
    %9 = arith.maximumf %7, %8 : vector<1x2xf32>
    %c0_9 = arith.constant 0 : index
    %c0_10 = arith.constant 0 : index
    %10 = vector.load %arg4[%c0_9, %c0_10] : memref<2x4xf32, #tpu.memory_space<vmem>>, vector<2x4xf32>
    %cst_11 = arith.constant dense<0.000000e+00> : vector<1x4xf32>
    %11 = tpu.matmul %9, %10, %cst_11 {dimension_numbers = #tpu.dot_dimension_numbers<[1], [0], [0], [1], [0, 0, 1, 1], [], []>} : vector<1x2xf32>, vector<2x4xf32>, vector<1x4xf32> -> vector<1x4xf32>
    %c0_12 = arith.constant 0 : index
    %c0_13 = arith.constant 0 : index
    %12 = vector.load %arg5[%c0_12, %c0_13] : memref<1x4xf32, #tpu.memory_space<vmem>>, vector<1x4xf32>
    %13 = arith.addf %11, %12 : vector<1x4xf32>
    %14 = arith.negf %13 : vector<1x4xf32>
    %15 = math.exp %14 : vector<1x4xf32>
    %cst_14 = arith.constant 1.000000e+00 : f32
    %16 = vector.broadcast %cst_14 : f32 to vector<1x4xf32>
    %17 = arith.addf %16, %15 : vector<1x4xf32>
    %18 = arith.divf %16, %17 : vector<1x4xf32>
    %c0_15 = arith.constant 0 : index
    %c0_16 = arith.constant 0 : index
    %19 = vector.load %arg6[%c0_15, %c0_16] : memref<4x32xf32, #tpu.memory_space<vmem>>, vector<4x32xf32>
    %cst_17 = arith.constant dense<0.000000e+00> : vector<1x32xf32>
    %20 = tpu.matmul %18, %19, %cst_17 {dimension_numbers = #tpu.dot_dimension_numbers<[1], [0], [0], [1], [0, 0, 1, 1], [], []>} : vector<1x4xf32>, vector<4x32xf32>, vector<1x32xf32> -> vector<1x32xf32>
    %21 = vector.shape_cast %20 : vector<1x32xf32> to vector<1x32x1xf32>
    %22 = vector.broadcast %21 : vector<1x32x1xf32> to vector<1x32x256xf32>
    %23 = arith.mulf %0, %22 : vector<1x32x256xf32>
    %c0_18 = arith.constant 0 : index
    %c0_19 = arith.constant 0 : index
    %c0_20 = arith.constant 0 : index
    %24 = vector.load %arg7[%c0_18, %c0_19, %c0_20] : memref<1x32x256xf32, #tpu.memory_space<vmem>>, vector<1x32x256xf32>
    tpu.vector_store %arg7[%c0_18, %c0_19, %c0_20], %23 {strides = array<i32>} : memref<1x32x256xf32, #tpu.memory_space<vmem>>, vector<1x32x256xf32>,
    return
  }
  func.func @transform_0(%arg0: i32) -> (i32, i32, i32) {
    %c0_i32 = arith.constant 0 : i32
    %c0_i32_0 = arith.constant 0 : i32
    %c0_i32_1 = arith.constant 0 : i32
    return %arg0, %c0_i32, %c0_i32_0 : i32, i32, i32
  }
  func.func @transform_1(%arg0: i32) -> (i32, i32) {
    %c0_i32 = arith.constant 0 : i32
    %c0_i32_0 = arith.constant 0 : i32
    %c0_i32_1 = arith.constant 0 : i32
    return %c0_i32, %c0_i32_0 : i32, i32
  }
  func.func @transform_2(%arg0: i32) -> (i32, i32) {
    %c0_i32 = arith.constant 0 : i32
    %c0_i32_0 = arith.constant 0 : i32
    %c0_i32_1 = arith.constant 0 : i32
    return %c0_i32, %c0_i32_0 : i32, i32
  }
  func.func @transform_3(%arg0: i32) -> (i32, i32) {
    %c0_i32 = arith.constant 0 : i32
    %c0_i32_0 = arith.constant 0 : i32
    %c0_i32_1 = arith.constant 0 : i32
    return %c0_i32, %c0_i32_0 : i32, i32
  }
  func.func @transform_4(%arg0: i32) -> (i32, i32) {
    %c0_i32 = arith.constant 0 : i32
    %c0_i32_0 = arith.constant 0 : i32
    %c0_i32_1 = arith.constant 0 : i32
    return %c0_i32, %c0_i32_0 : i32, i32
  }
  func.func @transform_5(%arg0: i32) -> (i32, i32) {
    %c0_i32 = arith.constant 0 : i32
    %c0_i32_0 = arith.constant 0 : i32
    %c0_i32_1 = arith.constant 0 : i32
    return %c0_i32, %c0_i32_0 : i32, i32
  }
  func.func @transform_6(%arg0: i32) -> (i32, i32, i32) {
    %c0_i32 = arith.constant 0 : i32
    %c0_i32_0 = arith.constant 0 : i32
    %c0_i32_1 = arith.constant 0 : i32
    return %arg0, %c0_i32, %c0_i32_0 : i32, i32, i32
  }
}

</mosaic_0001>

<llo_original>
// kernel: tpu_custom_call.1
$region0: #{tpu_custom_call.1}
  #allocation0 [shape = 'u32[]', space=smem, size = 0x4, offset = 0x4, fixed_abs, tag = 'smem constant byte address 0x4 - core index']
  #allocation1 [shape = 'u32[144,128]{1,0:T(1,128)}', space=vmem, size = 0x12000, scoped, tag = 'internal scratch']
  %s0 = inlined_call_operand.hbm [shape: f32[2,32,256], index: 0, kind: input, shape index: {}]
  %s1 = inlined_call_operand.vmem [shape: f32[32,2], index: 1, kind: input, shape index: {}]
  %s2 = inlined_call_operand.vmem [shape: f32[1,2], index: 2, kind: input, shape index: {}]
  %s3 = inlined_call_operand.vmem [shape: f32[2,4], index: 3, kind: input, shape index: {}]
  %s4 = inlined_call_operand.vmem [shape: f32[1,4], index: 4, kind: input, shape index: {}]
  %s5 = inlined_call_operand.vmem [shape: f32[4,32], index: 5, kind: input, shape index: {}]
  %s6 = inlined_call_operand.hbm [shape: f32[2,32,256], index: 6, kind: output, shape index: {}]
  %s7 = sld [smem:[#allocation0]]
  $region61: #{tpu_custom_call.1} parent=0
    _
  %s9 = ssub.s32 1, %s7
  %s10 = scalar_select 0, %s9, %s7
  $region1: #{tpu_custom_call.1} parent=0
    #allocation2 [shape = 'u8[65536]{0}', space=vmem, size = 0x10000, scoped, tag = 'input window, operand 0']
    #allocation3 [shape = 's32[2]{0}', space=sflag, size = 0x8, scoped, tag = 'scoped memory for tpu_custom_call.1']
    #allocation4 [shape = 's32[2]{0}', space=sflag, size = 0x8, scoped, tag = 'scoped memory for tpu_custom_call.1']
    #allocation5 [shape = 'u8[65536]{0}', space=vmem, size = 0x10000, scoped, tag = 'output window, operand 0']
    %11 = vsyncpa [#allocation3], 0
    %s12 = scalar_lea.sflag [#allocation3], 1
    %13 = vsyncpa %s12, 0
    %14 = vsyncpa [#allocation4], 0
    %s15 = scalar_lea.sflag [#allocation4], 1
    %16 = vsyncpa %s15, 0
    loop: start=0, step=1, limit=4
    $region2: #{tpu_custom_call.1} parent=1 // loop_pre_header
      _
    $region3: #{tpu_custom_call.1} parent=1 // loop_header
      %s18 = sphi 0, %s22
      %p19 = scmp.ge.s32.totalorder %s18, 4
      %s28 = sphi 0, %s30
      %s31 = sphi 0, %s28
      %s32 = sphi 0, %s31
      %s48 = sphi 0, %s32
      %s52 = sphi 0, %s52
      %s54 = sphi 0, %s52
      %s55 = sphi 0, %s54
      %s69 = sphi 0, %s55
      %s73 = sphi 0, %s73
      %s75 = sphi 0, %s73
      %s76 = sphi 0, %s75
      %s90 = sphi 0, %s76
      %s94 = sphi 0, %s94
      %s96 = sphi 0, %s94
      %s97 = sphi 0, %s96
      %s111 = sphi 0, %s97
      %s115 = sphi 0, %s115
      %s117 = sphi 0, %s115
      %s118 = sphi 0, %s117
      %s132 = sphi 0, %s118
      %s136 = sphi 0, %s136
      %s138 = sphi 0, %s136
      %s139 = sphi 0, %s138
      %s153 = sphi 0, %s139
      %s159 = sphi 0, %s161
      %s162 = sphi 0, %s159
      %s163 = sphi 0, %s162
      %s179 = sphi 0, %s163
    $region4: #{tpu_custom_call.1} parent=1 // loop_header_branch
      %21 = sbr.rel (%p19) target = $region8
    $region5: #{tpu_custom_call.1} parent=1 // loop_body
      %s23 = ssub.s32 %s18, 1
      %s24 = ssub.s32 %s18, 2
      %s25 = sadd.s32 %s18, 1
      %s26 = ssub.s32 %s18, %s25
      %p27 = scmp.eq.s32.totalorder %s26, 0
      %s29 = sadd.s32 %s28, 1
      %s30 = scalar_select %p27, %s28, %s29
      %p33 = pneg %p27
      %p34 = scmp.eq.s32.totalorder %s18, 1
      %p35 = por %p33, %p34
      %p36 = scmp.ne.s32.totalorder %s28, %s31
      %p37 = scmp.eq.s32.totalorder %s18, 0
      %p38 = por %p36, %p37
      %p39 = scmp.ne.s32.totalorder %s28, %s31
      %p40 = scmp.eq.s32.totalorder %s23, 1
      %p41 = por %p39, %p40
      %p42 = scmp.ne.s32.totalorder %s31, %s32
      %p43 = scmp.eq.s32.totalorder %s23, 0
      %p44 = por %p42, %p43
      %p45 = scmp.ne.s32.totalorder %s31, %s32
      %p46 = scmp.eq.s32.totalorder %s24, 1
      %p47 = por %p45, %p46
      %p49 = scmp.ne.s32.totalorder %s32, %s48
      %p50 = scmp.eq.s32.totalorder %s24, 0
      %p51 = por %p49, %p50
      %s53 = sadd.s32 %s52, 1
      %p56 = scmp.eq.s32.totalorder %s18, 1
      %p57 = scmp.ne.s32.totalorder %s52, %s54
      %p58 = scmp.eq.s32.totalorder %s18, 0
      %p59 = por %p57, %p58
      %p60 = scmp.ne.s32.totalorder %s52, %s54
      %p61 = scmp.eq.s32.totalorder %s23, 1
      %p62 = por %p60, %p61
      %p63 = scmp.ne.s32.totalorder %s54, %s55
      %p64 = scmp.eq.s32.totalorder %s23, 0
      %p65 = por %p63, %p64
      %p66 = scmp.ne.s32.totalorder %s54, %s55
      %p67 = scmp.eq.s32.totalorder %s24, 1
      %p68 = por %p66, %p67
      %p70 = scmp.ne.s32.totalorder %s55, %s69
      %p71 = scmp.eq.s32.totalorder %s24, 0
      %p72 = por %p70, %p71
      %s74 = sadd.s32 %s73, 1
      %p77 = scmp.eq.s32.totalorder %s18, 1
      %p78 = scmp.ne.s32.totalorder %s73, %s75
      %p79 = scmp.eq.s32.totalorder %s18, 0
      %p80 = por %p78, %p79
      %p81 = scmp.ne.s32.totalorder %s73, %s75
      %p82 = scmp.eq.s32.totalorder %s23, 1
      %p83 = por %p81, %p82
      %p84 = scmp.ne.s32.totalorder %s75, %s76
      %p85 = scmp.eq.s32.totalorder %s23, 0
      %p86 = por %p84, %p85
      %p87 = scmp.ne.s32.totalorder %s75, %s76
      %p88 = scmp.eq.s32.totalorder %s24, 1
      %p89 = por %p87, %p88
      %p91 = scmp.ne.s32.totalorder %s76, %s90
      %p92 = scmp.eq.s32.totalorder %s24, 0
      %p93 = por %p91, %p92
      %s95 = sadd.s32 %s94, 1
      %p98 = scmp.eq.s32.totalorder %s18, 1
      %p99 = scmp.ne.s32.totalorder %s94, %s96
      %p100 = scmp.eq.s32.totalorder %s18, 0
      %p101 = por %p99, %p100
      %p102 = scmp.ne.s32.totalorder %s94, %s96
      %p103 = scmp.eq.s32.totalorder %s23, 1
      %p104 = por %p102, %p103
      %p105 = scmp.ne.s32.totalorder %s96, %s97
      %p106 = scmp.eq.s32.totalorder %s23, 0
      %p107 = por %p105, %p106
      %p108 = scmp.ne.s32.totalorder %s96, %s97
      %p109 = scmp.eq.s32.totalorder %s24, 1
      %p110 = por %p108, %p109
      %p112 = scmp.ne.s32.totalorder %s97, %s111
      %p113 = scmp.eq.s32.totalorder %s24, 0
      %p114 = por %p112, %p113
      %s116 = sadd.s32 %s115, 1
      %p119 = scmp.eq.s32.totalorder %s18, 1
      %p120 = scmp.ne.s32.totalorder %s115, %s117
      %p121 = scmp.eq.s32.totalorder %s18, 0
      %p122 = por %p120, %p121
      %p123 = scmp.ne.s32.totalorder %s115, %s117
      %p124 = scmp.eq.s32.totalorder %s23, 1
      %p125 = por %p123, %p124
      %p126 = scmp.ne.s32.totalorder %s117, %s118
      %p127 = scmp.eq.s32.totalorder %s23, 0
      %p128 = por %p126, %p127
      %p129 = scmp.ne.s32.totalorder %s117, %s118
      %p130 = scmp.eq.s32.totalorder %s24, 1
      %p131 = por %p129, %p130
      %p133 = scmp.ne.s32.totalorder %s118, %s132
      %p134 = scmp.eq.s32.totalorder %s24, 0
      %p135 = por %p133, %p134
      %s137 = sadd.s32 %s136, 1
      %p140 = scmp.eq.s32.totalorder %s18, 1
      %p141 = scmp.ne.s32.totalorder %s136, %s138
      %p142 = scmp.eq.s32.totalorder %s18, 0
      %p143 = por %p141, %p142
      %p144 = scmp.ne.s32.totalorder %s136, %s138
      %p145 = scmp.eq.s32.totalorder %s23, 1
      %p146 = por %p144, %p145
      %p147 = scmp.ne.s32.totalorder %s138, %s139
      %p148 = scmp.eq.s32.totalorder %s23, 0
      %p149 = por %p147, %p148
      %p150 = scmp.ne.s32.totalorder %s138, %s139
      %p151 = scmp.eq.s32.totalorder %s24, 1
      %p152 = por %p150, %p151
      %p154 = scmp.ne.s32.totalorder %s139, %s153
      %p155 = scmp.eq.s32.totalorder %s24, 0
      %p156 = por %p154, %p155
      %s157 = ssub.s32 %s18, %s25
      %p158 = scmp.eq.s32.totalorder %s157, 0
      %s160 = sadd.s32 %s159, 1
      %s161 = scalar_select %p158, %s159, %s160
      %p164 = pneg %p158
      %p165 = scmp.eq.s32.totalorder %s18, 1
      %p166 = por %p164, %p165
      %p167 = scmp.ne.s32.totalorder %s159, %s162
      %p168 = scmp.eq.s32.totalorder %s18, 0
      %p169 = por %p167, %p168
      %p170 = scmp.ne.s32.totalorder %s159, %s162
      %p171 = scmp.eq.s32.totalorder %s23, 1
      %p172 = por %p170, %p171
      %p173 = scmp.ne.s32.totalorder %s162, %s163
      %p174 = scmp.eq.s32.totalorder %s23, 0
      %p175 = por %p173, %p174
      %p176 = scmp.ne.s32.totalorder %s162, %s163
      %p177 = scmp.eq.s32.totalorder %s24, 1
      %p178 = por %p176, %p177
      %p180 = scmp.ne.s32.totalorder %s163, %s179
      %p181 = scmp.eq.s32.totalorder %s24, 0
      %p182 = por %p180, %p181
      %p183 = scmp.le.s32.totalorder 1, %s18
      %p184 = scmp.lt.s32.totalorder %s18, 3
      %p185 = pnand %p183, %p184
      %p186 = pneg %p185
      // Predicated region
      $region9: #{tpu_custom_call.1} parent=5 // pred_check
        _
      $region10: #{tpu_custom_call.1} parent=5 // pred_check_branch
        %188 = sbr.rel (%p185) target = $region12
      $region11: #{tpu_custom_call.1} parent=5 // pred_region
        %s189 = ssub.s32 %s18, 1
        // Predicated region
        $region13: #{tpu_custom_call.1} parent=11 // pred_check
          %p190 = pneg %p65
        $region14: #{tpu_custom_call.1} parent=11 // pred_check_branch
          %192 = sbr.rel (%p190) target = $region16
        $region15: #{tpu_custom_call.1} parent=11 // pred_region
          _
        $region16: #{tpu_custom_call.1} parent=11 // pred_fallthru
          _
        // Predicated region
        $region17: #{tpu_custom_call.1} parent=11 // pred_check
          %p193 = pneg %p86
        $region18: #{tpu_custom_call.1} parent=11 // pred_check_branch
          %195 = sbr.rel (%p193) target = $region20
        $region19: #{tpu_custom_call.1} parent=11 // pred_region
          _
        $region20: #{tpu_custom_call.1} parent=11 // pred_fallthru
          _
        // Predicated region
        $region21: #{tpu_custom_call.1} parent=11 // pred_check
          %p196 = pneg %p107
        $region22: #{tpu_custom_call.1} parent=11 // pred_check_branch
          %198 = sbr.rel (%p196) target = $region24
        $region23: #{tpu_custom_call.1} parent=11 // pred_region
          _
        $region24: #{tpu_custom_call.1} parent=11 // pred_fallthru
          _
        // Predicated region
        $region25: #{tpu_custom_call.1} parent=11 // pred_check
          %p199 = pneg %p128
        $region26: #{tpu_custom_call.1} parent=11 // pred_check_branch
          %201 = sbr.rel (%p199) target = $region28
        $region27: #{tpu_custom_call.1} parent=11 // pred_region
          _
        $region28: #{tpu_custom_call.1} parent=11 // pred_fallthru
          _
        // Predicated region
        $region29: #{tpu_custom_call.1} parent=11 // pred_check
          %p202 = pneg %p149
        $region30: #{tpu_custom_call.1} parent=11 // pred_check_branch
          %204 = sbr.rel (%p202) target = $region32
        $region31: #{tpu_custom_call.1} parent=11 // pred_region
          _
        $region32: #{tpu_custom_call.1} parent=11 // pred_fallthru
          _
      $region12: #{tpu_custom_call.1} parent=5 // pred_fallthru
        _
      %p205 = scmp.lt.s32.totalorder %s18, 2
      // Predicated region
      $region33: #{tpu_custom_call.1} parent=5 // pred_check
        %p206 = pneg %p205
      $region34: #{tpu_custom_call.1} parent=5 // pred_check_branch
        %208 = sbr.rel (%p206) target = $region36
      $region35: #{tpu_custom_call.1} parent=5 // pred_region
        // Predicated region
        $region37: #{tpu_custom_call.1} parent=35 // pred_check
          %p209 = pneg %p38
        $region38: #{tpu_custom_call.1} parent=35 // pred_check_branch
          %211 = sbr.rel (%p209) target = $region40
        $region39: #{tpu_custom_call.1} parent=35 // pred_region
          %s212 = sand.u32 %s28, 1
          %s213 = scalar_lea.sflag [#allocation3], %s212
          %s214 = sand.u32 %s28, 1
          %s215 = smul.addr %s214, 64
          %s216 = scalar_lea.vmem [#allocation2], %s215
          %s218 = ssub.s32 1024, 1024
          %219 = vsyncadd %s213, %s218
          %s220 = smul.addr %s18, 8
          %s221 = smul.addr %s220, 128
          %s222 = scalar_lea.hbm %s0, %s221
          %s223 = sshll.u32 %s216, 4
          %s224 = int_to_ptr.vmem [resolvable:$true] %s223
          %229 = dma.hbm_to_vmem [thread:$0]  %s222, 1024, %s224, %s213, 256, 256, 16
        $region40: #{tpu_custom_call.1} parent=35 // pred_fallthru
          _
      $region36: #{tpu_custom_call.1} parent=5 // pred_fallthru
        _
      %p230 = scmp.le.s32.totalorder 1, %s18
      %p231 = scmp.lt.s32.totalorder %s18, 3
      %p232 = pnand %p230, %p231
      %p233 = pneg %p232
      // Predicated region
      $region41: #{tpu_custom_call.1} parent=5 // pred_check
        _
      $region42: #{tpu_custom_call.1} parent=5 // pred_check_branch
        %235 = sbr.rel (%p232) target = $region44
      $region43: #{tpu_custom_call.1} parent=5 // pred_region
        %s236 = ssub.s32 %s18, 1
        %s237 = sand.u32 %s31, 1
        %s238 = scalar_lea.sflag [#allocation3], %s237
        %s239 = sand.u32 %s31, 1
        %s240 = smul.addr %s239, 64
        %s241 = scalar_lea.vmem [#allocation2], %s240
        // Predicated region
        $region45: #{tpu_custom_call.1} parent=43 // pred_check
          %p242 = pneg %p44
        $region46: #{tpu_custom_call.1} parent=43 // pred_check_branch
          %244 = sbr.rel (%p242) target = $region48
        $region47: #{tpu_custom_call.1} parent=43 // pred_region
          %245 = dma.done %s238, 1024
        $region48: #{tpu_custom_call.1} parent=43 // pred_fallthru
          _
        %s246 = sand.u32 %s31, 1
        %s247 = scalar_lea.sflag [#allocation3], %s246
        %s248 = sand.u32 %s31, 1
        %s249 = smul.addr %s248, 64
        %s250 = scalar_lea.vmem [#allocation2], %s249
        %p251 = pneg %p44
        %p252 = pneg %p41
        %p253 = pneg %p65
        %p254 = pneg %p62
        %p255 = pneg %p86
        %p256 = pneg %p83
        %p257 = pneg %p107
        %p258 = pneg %p104
        %p259 = pneg %p128
        %p260 = pneg %p125
        %p261 = pneg %p149
        %p262 = pneg %p146
        %p263 = pneg %p175
        %p264 = pneg %p172
        %s265 = sand.u32 %s162, 1
        %s266 = scalar_lea.sflag [#allocation4], %s265
        %s267 = sand.u32 %s162, 1
        %s268 = smul.addr %s267, 64
        %s269 = scalar_lea.vmem [#allocation5], %s268
        %v270 = vld [vmem:[%s241] sm:$0xff]
        %v271 = vld [vmem:[%s241 + $0x8] sm:$0xff]
        %v272 = vld [vmem:[%s241 + $0x10] sm:$0xff]
        %v273 = vld [vmem:[%s241 + $0x18] sm:$0xff]
        %v274 = vld [vmem:[%s241 + $0x20] sm:$0xff]
        %v275 = vld [vmem:[%s241 + $0x28] sm:$0xff]
        %v276 = vld [vmem:[%s241 + $0x30] sm:$0xff]
        %v277 = vld [vmem:[%s241 + $0x38] sm:$0xff]
        %v278 = vadd.f32 %v270, %v271
        %279 = vadd.xlane.f32.xlu0 %v278
        %v280 = vpop.xlane.xlu0 %279
        %v281 = vadd.f32 %v272, %v273
        %282 = vadd.xlane.f32.xlu0 %v281
        %v283 = vpop.xlane.xlu0 %282
        %v284 = vadd.f32 %v274, %v275
        %285 = vadd.xlane.f32.xlu0 %v284
        %v286 = vpop.xlane.xlu0 %285
        %v287 = vadd.f32 %v276, %v277
        %288 = vadd.xlane.f32.xlu0 %v287
        %v289 = vpop.xlane.xlu0 %288
        %v290 = vmul.f32 %v280, 0.00390625
        %v291 = vmul.f32 %v283, 0.00390625
        %v292 = vmul.f32 %v286, 0.00390625
        %v293 = vmul.f32 %v289, 0.00390625
        %v294 = vld [vmem:[%s1] sm:$0xff]
        %v295 = vld [vmem:[%s1 + $0x8] sm:$0xff]
        %v296 = vld [vmem:[%s1 + $0x10] sm:$0xff]
        %v297 = vld [vmem:[%s1 + $0x18] sm:$0xff]
        %v298 = vld [vmem:[%s2] sm:$0x1]
        %v303 = vlaneseq
        %v304 = vand.u32 %v303, 127
        %v305 = vlaneseq
        %v306 = vshrl.u32 %v305, 7
        %v307 = vsub.s32 %v304, %v306
        %v308 = vrot.slane %v290, %v307
        %v309 = vadd.s32 %v304, 4294967288
        %v310 = vlaneseq
        %v311 = vshrl.u32 %v310, 7
        %v312 = vsub.s32 %v309, %v311
        %v313 = vrot.slane %v291, %v312
        %vm314 = vcmask 130112
        %v315 = vsel %vm314, %v313, %v308
        %v316 = vadd.s32 %v304, 4294967280
        %v317 = vlaneseq
        %v318 = vshrl.u32 %v317, 7
        %v319 = vsub.s32 %v316, %v318
        %v320 = vrot.slane %v292, %v319
        %vm321 = vcmask 195712
        %v322 = vsel %vm321, %v320, %v315
        %v323 = vadd.s32 %v304, 4294967272
        %v324 = vlaneseq
        %v325 = vshrl.u32 %v324, 7
        %v326 = vsub.s32 %v323, %v325
        %v327 = vrot.slane %v293, %v326
        %vm328 = vcmask 261312
        %v329 = vsel %vm328, %v327, %v322
        %vm330 = vcmask 261120
        %v331 = vsel %vm330, %v329, 0
        %333 = vmatprep.subr.mxu0 0.0
        %334 = vmatpush1.msra.mxu0 0.0
        %335 = vmatprep.subr.mxu0 0.0
        %336 = vmatpush1.msra.mxu0 0.0
        %337 = vmatprep.subr.mxu0 0.0
        %338 = vmatpush1.msra.mxu0 0.0
        %339 = vmatprep.subr.mxu0 0.0
        %340 = vmatpush1.msra.mxu0 0.0
        %341 = vmatprep.subr.mxu0 0.0
        %342 = vmatpush1.msra.mxu0 0.0
        %343 = vmatprep.subr.mxu0 0.0
        %344 = vmatpush1.msra.mxu0 0.0
        %345 = vmatprep.subr.mxu0 0.0
        %346 = vmatpush1.msra.mxu0 0.0
        %347 = vmatprep.subr.mxu0 0.0
        %348 = vmatpush1.msra.mxu0 0.0
        %349 = vmatprep.subr.mxu0 0.0
        %350 = vmatpush1.msra.mxu0 0.0
        %351 = vmatprep.subr.mxu0 0.0
        %352 = vmatpush1.msra.mxu0 0.0
        %353 = vmatprep.subr.mxu0 0.0
        %354 = vmatpush1.msra.mxu0 0.0
        %355 = vmatprep.subr.mxu0 0.0
        %356 = vmatpush1.msra.mxu0 0.0
        %357 = vmatprep.subr.mxu0 0.0
        %358 = vmatpush1.msra.mxu0 %v297
        %359 = vmatprep.subr.mxu0 0.0
        %360 = vmatpush1.msra.mxu0 %v296
        %361 = vmatprep.subr.mxu0 0.0
        %362 = vmatpush1.msra.mxu0 %v295
        %363 = vmatprep.subr.mxu0 0.0
        %364 = vmatpush1.msra.mxu0 %v294
        %365 = vmatprep.subr.mxu0 0.0
        %366 = vmatpush2.msra.mxu0 0.0
        %367 = vmatprep.subr.mxu0 0.0
        %368 = vmatpush2.msra.mxu0 0.0
        %369 = vmatprep.subr.mxu0 0.0
        %370 = vmatpush2.msra.mxu0 0.0
        %371 = vmatprep.subr.mxu0 0.0
        %372 = vmatpush2.msra.mxu0 0.0
        %373 = vmatprep.subr.mxu0 0.0
        %374 = vmatpush2.msra.mxu0 0.0
        %375 = vmatprep.subr.mxu0 0.0
        %376 = vmatpush2.msra.mxu0 0.0
        %377 = vmatprep.subr.mxu0 0.0
        %378 = vmatpush2.msra.mxu0 0.0
        %379 = vmatprep.subr.mxu0 0.0
        %380 = vmatpush2.msra.mxu0 0.0
        %381 = vmatprep.subr.mxu0 0.0
        %382 = vmatpush2.msra.mxu0 0.0
        %383 = vmatprep.subr.mxu0 0.0
        %384 = vmatpush2.msra.mxu0 0.0
        %385 = vmatprep.subr.mxu0 0.0
        %386 = vmatpush2.msra.mxu0 0.0
        %387 = vmatprep.subr.mxu0 0.0
        %388 = vmatpush2.msra.mxu0 0.0
        %389 = vmatprep.subr.mxu0 0.0
        %390 = vmatpush2.msra.mxu0 0.0
        %391 = vmatprep.subr.mxu0 0.0
        %392 = vmatpush2.msra.mxu0 0.0
        %393 = vmatprep.subr.mxu0 0.0
        %394 = vmatpush2.msra.mxu0 0.0
        %395 = vmatprep.subr.mxu0 0.0
        %396 = vmatpush2.msra.mxu0 0.0
        %397 = vmatprep.mubr.f32.mxu0 0.0
        %398 = vmatmul.mubr.f32.gmra.mxu0 %v331
        %v399 = vpop.f32.mrf.mxu0
        %v400 = vadd.f32 %v298, %v399
        %v401 = vpop.f32.mrf.mxu0
        %402 = vdwg.mxu0
        %v403 = vmax.f32 %v400, 0.0
        %v404 = vld [vmem:[%s3] sm:$0x3]
        %v405 = vld [vmem:[%s4] sm:$0x1]
        %vm406 = vcmask 15360
        %v408 = vsel %vm406, %v403, 0
        %vm410 = vcmask 1041408
        %v412 = vsel %vm410, %v404, 0
        %414 = vmatprep.subr.mxu0 0.0
        %415 = vmatpush1.msra.mxu0 0.0
        %416 = vmatprep.subr.mxu0 0.0
        %417 = vmatpush1.msra.mxu0 0.0
        %418 = vmatprep.subr.mxu0 0.0
        %419 = vmatpush1.msra.mxu0 0.0
        %420 = vmatprep.subr.mxu0 0.0
        %421 = vmatpush1.msra.mxu0 0.0
        %422 = vmatprep.subr.mxu0 0.0
        %423 = vmatpush1.msra.mxu0 0.0
        %424 = vmatprep.subr.mxu0 0.0
        %425 = vmatpush1.msra.mxu0 0.0
        %426 = vmatprep.subr.mxu0 0.0
        %427 = vmatpush1.msra.mxu0 0.0
        %428 = vmatprep.subr.mxu0 0.0
        %429 = vmatpush1.msra.mxu0 0.0
        %430 = vmatprep.subr.mxu0 0.0
        %431 = vmatpush1.msra.mxu0 0.0
        %432 = vmatprep.subr.mxu0 0.0
        %433 = vmatpush1.msra.mxu0 0.0
        %434 = vmatprep.subr.mxu0 0.0
        %435 = vmatpush1.msra.mxu0 0.0
        %436 = vmatprep.subr.mxu0 0.0
        %437 = vmatpush1.msra.mxu0 0.0
        %438 = vmatprep.subr.mxu0 0.0
        %439 = vmatpush1.msra.mxu0 0.0
        %440 = vmatprep.subr.mxu0 0.0
        %441 = vmatpush1.msra.mxu0 0.0
        %442 = vmatprep.subr.mxu0 0.0
        %443 = vmatpush1.msra.mxu0 0.0
        %444 = vmatprep.subr.mxu0 0.0
        %445 = vmatpush1.msra.mxu0 %v412
        %446 = vmatprep.subr.mxu0 0.0
        %447 = vmatpush2.msra.mxu0 0.0
        %448 = vmatprep.subr.mxu0 0.0
        %449 = vmatpush2.msra.mxu0 0.0
        %450 = vmatprep.subr.mxu0 0.0
        %451 = vmatpush2.msra.mxu0 0.0
        %452 = vmatprep.subr.mxu0 0.0
        %453 = vmatpush2.msra.mxu0 0.0
        %454 = vmatprep.subr.mxu0 0.0
        %455 = vmatpush2.msra.mxu0 0.0
        %456 = vmatprep.subr.mxu0 0.0
        %457 = vmatpush2.msra.mxu0 0.0
        %458 = vmatprep.subr.mxu0 0.0
        %459 = vmatpush2.msra.mxu0 0.0
        %460 = vmatprep.subr.mxu0 0.0
        %461 = vmatpush2.msra.mxu0 0.0
        %462 = vmatprep.subr.mxu0 0.0
        %463 = vmatpush2.msra.mxu0 0.0
        %464 = vmatprep.subr.mxu0 0.0
        %465 = vmatpush2.msra.mxu0 0.0
        %466 = vmatprep.subr.mxu0 0.0
        %467 = vmatpush2.msra.mxu0 0.0
        %468 = vmatprep.subr.mxu0 0.0
        %469 = vmatpush2.msra.mxu0 0.0
        %470 = vmatprep.subr.mxu0 0.0
        %471 = vmatpush2.msra.mxu0 0.0
        %472 = vmatprep.subr.mxu0 0.0
        %473 = vmatpush2.msra.mxu0 0.0
        %474 = vmatprep.subr.mxu0 0.0
        %475 = vmatpush2.msra.mxu0 0.0
        %476 = vmatprep.subr.mxu0 0.0
        %477 = vmatpush2.msra.mxu0 0.0
        %478 = vmatprep.mubr.f32.mxu0 0.0
        %479 = vmatmul.mubr.f32.gmra.mxu0 %v408
        %v480 = vpop.f32.mrf.mxu0
        %v481 = vadd.f32 %v405, %v480
        %v482 = vpop.f32.mrf.mxu0
        %483 = vdwg.mxu0
        %v484 = vxor.u32 %v481, 2147483648
        %v485 = vmul.f32 %v484, 1.442695
        %v486 = vpow.pop %v485
        %v487 = vadd.f32 %v486, 1.0
        %v488 = vrcp.pop %v487
        %v489 = vmul.f32 1.0, %v488
        %v490 = vld [vmem:[%s5] sm:$0xf]
        %vm491 = vcmask 31744
        %v493 = vsel %vm491, %v489, 0
        %vm495 = vcmask 1043456
        %v497 = vsel %vm495, %v490, 0
        %499 = vmatprep.subr.mxu0 0.0
        %500 = vmatpush1.msra.mxu0 0.0
        %501 = vmatprep.subr.mxu0 0.0
        %502 = vmatpush1.msra.mxu0 0.0
        %503 = vmatprep.subr.mxu0 0.0
        %504 = vmatpush1.msra.mxu0 0.0
        %505 = vmatprep.subr.mxu0 0.0
        %506 = vmatpush1.msra.mxu0 0.0
        %507 = vmatprep.subr.mxu0 0.0
        %508 = vmatpush1.msra.mxu0 0.0
        %509 = vmatprep.subr.mxu0 0.0
        %510 = vmatpush1.msra.mxu0 0.0
        %511 = vmatprep.subr.mxu0 0.0
        %512 = vmatpush1.msra.mxu0 0.0
        %513 = vmatprep.subr.mxu0 0.0
        %514 = vmatpush1.msra.mxu0 0.0
        %515 = vmatprep.subr.mxu0 0.0
        %516 = vmatpush1.msra.mxu0 0.0
        %517 = vmatprep.subr.mxu0 0.0
        %518 = vmatpush1.msra.mxu0 0.0
        %519 = vmatprep.subr.mxu0 0.0
        %520 = vmatpush1.msra.mxu0 0.0
        %521 = vmatprep.subr.mxu0 0.0
        %522 = vmatpush1.msra.mxu0 0.0
        %523 = vmatprep.subr.mxu0 0.0
        %524 = vmatpush1.msra.mxu0 0.0
        %525 = vmatprep.subr.mxu0 0.0
        %526 = vmatpush1.msra.mxu0 0.0
        %527 = vmatprep.subr.mxu0 0.0
        %528 = vmatpush1.msra.mxu0 0.0
        %529 = vmatprep.subr.mxu0 0.0
        %530 = vmatpush1.msra.mxu0 %v497
        %531 = vmatprep.subr.mxu0 0.0
        %532 = vmatpush2.msra.mxu0 0.0
        %533 = vmatprep.subr.mxu0 0.0
        %534 = vmatpush2.msra.mxu0 0.0
        %535 = vmatprep.subr.mxu0 0.0
        %536 = vmatpush2.msra.mxu0 0.0
        %537 = vmatprep.subr.mxu0 0.0
        %538 = vmatpush2.msra.mxu0 0.0
        %539 = vmatprep.subr.mxu0 0.0
        %540 = vmatpush2.msra.mxu0 0.0
        %541 = vmatprep.subr.mxu0 0.0
        %542 = vmatpush2.msra.mxu0 0.0
        %543 = vmatprep.subr.mxu0 0.0
        %544 = vmatpush2.msra.mxu0 0.0
        %545 = vmatprep.subr.mxu0 0.0
        %546 = vmatpush2.msra.mxu0 0.0
        %547 = vmatprep.subr.mxu0 0.0
        %548 = vmatpush2.msra.mxu0 0.0
        %549 = vmatprep.subr.mxu0 0.0
        %550 = vmatpush2.msra.mxu0 0.0
        %551 = vmatprep.subr.mxu0 0.0
        %552 = vmatpush2.msra.mxu0 0.0
        %553 = vmatprep.subr.mxu0 0.0
        %554 = vmatpush2.msra.mxu0 0.0
        %555 = vmatprep.subr.mxu0 0.0
        %556 = vmatpush2.msra.mxu0 0.0
        %557 = vmatprep.subr.mxu0 0.0
        %558 = vmatpush2.msra.mxu0 0.0
        %559 = vmatprep.subr.mxu0 0.0
        %560 = vmatpush2.msra.mxu0 0.0
        %561 = vmatprep.subr.mxu0 0.0
        %562 = vmatpush2.msra.mxu0 0.0
        %563 = vmatprep.mubr.f32.mxu0 0.0
        %564 = vmatmul.mubr.f32.gmra.mxu0 %v493
        %v565 = vpop.f32.mrf.mxu0
        %v566 = vadd.f32 0.0, %v565
        %v567 = vpop.f32.mrf.mxu0
        %568 = vdwg.mxu0
        %v569 = vlaneseq
        %v570 = vshrl.u32 %v569, 7
        %v571 = vsub.s32 0, %v570
        %v572 = vrot.slane %v566, %v571
        %574 = vbcast.lane.b32.xlu0 %v572, 256
        %v575 = vpop.permute.xlu0 %574
        %s577 = sor.u32 256, 8
        %578 = vbcast.lane.b32.xlu0 %v572, %s577
        %v579 = vpop.permute.xlu0 %578
        %s581 = sor.u32 256, 16
        %582 = vbcast.lane.b32.xlu0 %v572, %s581
        %v583 = vpop.permute.xlu0 %582
        %s585 = sor.u32 256, 24
        %586 = vbcast.lane.b32.xlu0 %v572, %s585
        %v587 = vpop.permute.xlu0 %586
        %v588 = vmul.f32 %v270, %v575
        %v589 = vmul.f32 %v271, %v575
        %v590 = vmul.f32 %v272, %v579
        %v591 = vmul.f32 %v273, %v579
        %v592 = vmul.f32 %v274, %v583
        %v593 = vmul.f32 %v275, %v583
        %v594 = vmul.f32 %v276, %v587
        %v595 = vmul.f32 %v277, %v587
        %596 = vst [vmem:[%s269] sm:$0xff] %v588
        %597 = vst [vmem:[%s269 + $0x8] sm:$0xff] %v589
        %598 = vst [vmem:[%s269 + $0x10] sm:$0xff] %v590
        %599 = vst [vmem:[%s269 + $0x18] sm:$0xff] %v591
        %600 = vst [vmem:[%s269 + $0x20] sm:$0xff] %v592
        %601 = vst [vmem:[%s269 + $0x28] sm:$0xff] %v593
        %602 = vst [vmem:[%s269 + $0x30] sm:$0xff] %v594
        %603 = vst [vmem:[%s269 + $0x38] sm:$0xff] %v595
        %s604 = sand.u32 %s162, 1
        %s605 = scalar_lea.sflag [#allocation4], %s604
        %s606 = sand.u32 %s162, 1
        %s607 = smul.addr %s606, 64
        %s608 = scalar_lea.vmem [#allocation5], %s607
        // Predicated region
        $region49: #{tpu_custom_call.1} parent=43 // pred_check
          %p609 = pneg %p172
        $region50: #{tpu_custom_call.1} parent=43 // pred_check_branch
          %611 = sbr.rel (%p609) target = $region52
        $region51: #{tpu_custom_call.1} parent=43 // pred_region
          %s613 = ssub.s32 1024, 1024
          %614 = vsyncadd %s605, %s613
          %s615 = smul.addr %s23, 8
          %s616 = smul.addr %s615, 128
          %s617 = scalar_lea.hbm %s6, %s616
          %s618 = sshll.u32 %s608, 4
          %s619 = int_to_ptr.vmem [resolvable:$true] %s618
          %624 = dma.vmem_to_hbm [thread:$0]  %s619, 1024, %s617, %s605, 256, 256, 16
        $region52: #{tpu_custom_call.1} parent=43 // pred_fallthru
          _
      $region44: #{tpu_custom_call.1} parent=5 // pred_fallthru
        _
      %p625 = scmp.le.s32.totalorder 2, %s18
      // Predicated region
      $region53: #{tpu_custom_call.1} parent=5 // pred_check
        %p626 = pneg %p625
      $region54: #{tpu_custom_call.1} parent=5 // pred_check_branch
        %628 = sbr.rel (%p626) target = $region56
      $region55: #{tpu_custom_call.1} parent=5 // pred_region
        %s629 = ssub.s32 %s18, 2
        // Predicated region
        $region57: #{tpu_custom_call.1} parent=55 // pred_check
          %p630 = pneg %p178
        $region58: #{tpu_custom_call.1} parent=55 // pred_check_branch
          %632 = sbr.rel (%p630) target = $region60
        $region59: #{tpu_custom_call.1} parent=55 // pred_region
          %s633 = sand.u32 %s163, 1
          %s634 = scalar_lea.sflag [#allocation4], %s633
          %s635 = sand.u32 %s163, 1
          %s636 = smul.addr %s635, 64
          %s637 = scalar_lea.vmem [#allocation5], %s636
          %638 = dma.done %s634, 1024
        $region60: #{tpu_custom_call.1} parent=55 // pred_fallthru
          _
      $region56: #{tpu_custom_call.1} parent=5 // pred_fallthru
        _
    $region6: #{tpu_custom_call.1} parent=1 // loop_footer
      %s22 = sadd.s32 1, %s18
    $region7: #{tpu_custom_call.1} parent=1 // loop_footer_branch
      %17 = sbr.rel target = $region3
    $region8: #{tpu_custom_call.1} parent=1 // loop_exit
      _
    %639 = vsyncpa [#allocation3], 1
    %s640 = scalar_lea.sflag [#allocation3], 1
    %641 = vsyncpa %s640, 1
    %642 = vsyncpa [#allocation4], 1
    %s643 = scalar_lea.sflag [#allocation4], 1
    %644 = vsyncpa %s643, 1

</llo_original>
